<compile_context>
chip_gen: v6e
topology: v6e:2x2x1
jax: 0.10.0
libtpu: 0.0.40
codegen_flags: <defaults>
</compile_context>

<pallas_src>
import functools

import jax
import jax.numpy as jnp
from jax.experimental import pallas as pl
from jax.experimental.pallas import tpu as pltpu


def _round_up(x: int, m: int) -> int:
    return ((x + m - 1) // m) * m


def _select_config() -> dict:
    """Per-TPU-generation tile sizes and VMEM limit (best effort, safe default)."""
    kind = ""
    try:
        kind = jax.devices()[0].device_kind.lower()
    except Exception:
        pass
    if "v7" in kind or "7x" in kind:
        # 64 MiB VMEM per TC: smaller expert tile, leave headroom below the ceiling.
        return dict(tm=512, te=256, vmem_limit_bytes=56 * 1024 * 1024)
    if "v6" in kind:
        # Weight-stream break-even ~tm=650; 128 MiB physical VMEM.
        return dict(tm=1024, te=512, vmem_limit_bytes=100 * 1024 * 1024)
    if "v5" in kind:
        # Break-even ~tm=240; tm=256 already near the roofline crossover.
        return dict(tm=256, te=512, vmem_limit_bytes=64 * 1024 * 1024)
    # Unknown backend (e.g. interpret mode): conservative defaults.
    return dict(tm=256, te=512, vmem_limit_bytes=64 * 1024 * 1024)


def _expert_kernel(x_ref, wgu_ref, wd_ref, o_ref, acc_ref, *, te, tc):
    """One (token-tile i, expert-tile j) grid step of the SwiGLU expert MLP.

    x_ref   : (tm, dh_pad)      bf16 token tile (resident across the j axis)
    wgu_ref : (dh_pad, 2 * te)  bf16 contiguous [Wg_c | Wu_c]-chunked slab j
    wd_ref  : (te, dh_pad)      bf16 W_down slab j
    o_ref   : (tm, dh_pad)      bf16 output tile (written on the last j step)
    acc_ref : (tm, dh_pad) f32  accumulator, resident across the j axis
    """
    j = pl.program_id(1)
    x = x_ref[...]
    nc = te // tc  # in-kernel chunks per expert tile

    def chunk_partial(col_off, row_off):
        # One fused gate/up MXU pass over a tc-wide expert chunk, f32 accumulation.
        gu = jnp.dot(
            x, wgu_ref[:, pl.ds(col_off, 2 * tc)], preferred_element_type=jnp.float32
        )
        gate = gu[:, :tc]
        up = gu[:, tc:]
        # SiLU(gate) * up kept in f32 (sigmoid lands on the EUP slot).
        h = (gate * jax.nn.sigmoid(gate)) * up
        return jnp.dot(
            h.astype(wd_ref.dtype),
            wd_ref[pl.ds(row_off, tc), :],
            preferred_element_type=jnp.float32,
        )

    # Chunk 0: on the very first expert step, assign directly (no zero-init/RMW).
    p0 = chunk_partial(0, 0)

    @pl.when(j == 0)
    def _assign():
        acc_ref[...] = p0

    @pl.when(j > 0)
    def _accum():
        acc_ref[...] += p0

    if nc > 1:
        def body(c, carry):
            col = pl.multiple_of(c * (2 * tc), 2 * tc)
            row = pl.multiple_of(c * tc, tc)
            acc_ref[...] += chunk_partial(col, row)
            return carry

        jax.lax.fori_loop(1, nc, body, None, unroll=True)

    @pl.when(j == pl.num_programs(1) - 1)
    def _store():
        o_ref[...] = acc_ref[...].astype(o_ref.dtype)


def pack_expert_weights(w_gate, w_up, w_down, *, te=512, tc=None,
                        weight_dtype=jnp.bfloat16):
    """One-time weight preparation (kept out of the per-call path).

    w_gate, w_up : [d_expert, d_hidden]   (PyTorch nn.Linear layout)
    w_down       : [d_hidden, d_expert]   (PyTorch nn.Linear layout)

    Returns (wgu, wd, te, tc):
      wgu : [nj, dh_pad, 2*te]  contiguous per-expert-tile slabs; within a slab
            the columns are tc-chunk interleaved [Wg_c | Wu_c | Wg_{c+1} | ...]
      wd  : [de_pad, dh_pad]    matmul-ready, zero-padded W_down
      te  : expert tile actually used (divides de_pad, multiple of 128)
      tc  : in-kernel chunk width (divides te, multiple of 128, <= 256)
    """
    # NOTE: weight_dtype could be int8 (v5e/v6e) or fp8 (v7x) with per-channel
    # scales applied after the f32 accumulation to halve the dominant HBM
    # stream; bf16 kept here for accuracy parity with the reference module.
    de, dh = w_gate.shape
    dh_pad = _round_up(dh, 128)
    if de <= te:
        te = _round_up(de, 128)
        de_pad = te
    else:
        de_pad = _round_up(de, te)
    if tc is None:
        tc = te if te <= 256 else (256 if te % 256 == 0 else 128)
    assert te % tc == 0 and tc % 128 == 0

    def pad_t(w):  # [de, dh] -> matmul-ready zero-padded [dh_pad, de_pad]
        w = w.T.astype(weight_dtype)
        return jnp.zeros((dh_pad, de_pad), weight_dtype).at[:dh, :de].set(w)

    wg = pad_t(w_gate)
    wu = pad_t(w_up)
    nj = de_pad // te
    nc_total = de_pad // tc
    # Interleave per tc-chunk: packed chunk c = [Wg_c | Wu_c].
    wgu = jnp.concatenate(
        [wg.reshape(dh_pad, nc_total, tc), wu.reshape(dh_pad, nc_total, tc)], axis=-1
    ).reshape(dh_pad, 2 * de_pad)
    # Regroup so each expert-tile slab j is one contiguous (dh_pad, 2*te) block.
    wgu = wgu.reshape(dh_pad, nj, 2 * te).transpose(1, 0, 2)

    wd = (
        jnp.zeros((de_pad, dh_pad), weight_dtype)
        .at[:de, :dh]
        .set(w_down.T.astype(weight_dtype))
    )
    return wgu, wd, te, tc


@functools.partial(
    jax.jit,
    static_argnames=("te", "tc", "tm", "compute_dtype", "vmem_limit_bytes"),
)
def expert_forward(
    x,
    wgu,
    wd,
    *,
    te,
    tc,
    tm=256,
    compute_dtype=jnp.bfloat16,
    vmem_limit_bytes=64 * 1024 * 1024,
):
    """x: [batch, seq, d_hidden]; wgu/wd/te/tc from pack_expert_weights."""
    b, s, dh = x.shape
    de_pad, dh_pad = wd.shape
    nj = wgu.shape[0]
    n = b * s

    # Token tile: large by default, clamped to the token count and rounded to a
    # multiple of 16 (bf16 sublane pack) so small-n paths keep packed tiles.
    tm = max(16, min(tm, _round_up(n, 16)))
    n_pad = _round_up(n, tm)

    x2 = x.reshape(n, dh)
    if x2.dtype != compute_dtype:
        x2 = x2.astype(compute_dtype)
    if n_pad != n or dh_pad != dh:
        x2 = jnp.pad(x2, ((0, n_pad - n), (0, dh_pad - dh)))

    grid = (n_pad // tm, nj)
    n_token_tiles = n_pad // tm

    itemsize = jnp.dtype(compute_dtype).itemsize
    weight_bytes = (wgu.size + wd.size) * jnp.dtype(wgu.dtype).itemsize
    cost = pl.CostEstimate(
        flops=6 * n_pad * dh_pad * de_pad,
        transcendentals=n_pad * de_pad,
        bytes_accessed=(
            n_pad * dh_pad * (2 * itemsize)          # activations in + out (bf16)
            + weight_bytes * n_token_tiles           # weights re-streamed per token tile
        ),
    )

    kernel = functools.partial(_expert_kernel, te=te, tc=tc)

    out = pl.pallas_call(
        kernel,
        out_shape=jax.ShapeDtypeStruct((n_pad, dh_pad), compute_dtype),
        grid_spec=pltpu.PrefetchScalarGridSpec(
            num_scalar_prefetch=0,
            grid=grid,
            in_specs=[
                pl.BlockSpec((tm, dh_pad), lambda i, j: (i, 0)),            # x tile
                pl.BlockSpec((None, dh_pad, 2 * te), lambda i, j: (j, 0, 0)),  # slab j
                pl.BlockSpec((te, dh_pad), lambda i, j: (j, 0)),            # Wd slab j
            ],
            out_specs=pl.BlockSpec((tm, dh_pad), lambda i, j: (i, 0)),
            scratch_shapes=[pltpu.VMEM((tm, dh_pad), jnp.float32)],
        ),
        compiler_params=pltpu.CompilerParams(
            dimension_semantics=("parallel", "arbitrary"),
            vmem_limit_bytes=vmem_limit_bytes,
        ),
        cost_estimate=cost,
    )(x2, wgu, wd)

    out = out[:n, :dh].reshape(b, s, dh)
    if out.dtype != x.dtype:
        out = out.astype(x.dtype)
    return out


def expert_reference(x, w_gate, w_up, w_down):
    gate = jax.nn.silu(jnp.einsum("bsh,eh->bse", x, w_gate))
    up = jnp.einsum("bsh,eh->bse", x, w_up)
    return jnp.einsum("bse,he->bsh", gate * up, w_down)


if __name__ == "__main__":
    # Small config consistent with the module: d_hidden=32, d_expert=64.
    batch, seq, d_hidden, d_expert = 2, 8, 32, 64

    key = jax.random.PRNGKey(0)
    kx, kg, ku, kd = jax.random.split(key, 4)

    x = jax.random.normal(kx, (batch, seq, d_hidden), dtype=jnp.float32)
    # Deterministic "Linear"-style init (scaled uniform), PyTorch weight layout.
    bound_h = 1.0 / (d_hidden ** 0.5)
    bound_e = 1.0 / (d_expert ** 0.5)
    w_gate = jax.random.uniform(kg, (d_expert, d_hidden), jnp.float32, -bound_h, bound_h)
    w_up = jax.random.uniform(ku, (d_expert, d_hidden), jnp.float32, -bound_h, bound_h)
    w_down = jax.random.uniform(kd, (d_hidden, d_expert), jnp.float32, -bound_e, bound_e)

    # Per-generation tile / VMEM-limit selection + one-time weight packing
    # (transpose / pad / bf16 cast / slab layout outside the hot path).
    cfg = _select_config()
    wgu, wd, te, tc = pack_expert_weights(w_gate, w_up, w_down, te=cfg["te"])

    out = expert_forward(
        x, wgu, wd, te=te, tc=tc, tm=cfg["tm"],
        vmem_limit_bytes=cfg["vmem_limit_bytes"],
    )
    out = jax.block_until_ready(out)

    ref = expert_reference(x, w_gate, w_up, w_down)
    assert out.shape == (batch, seq, d_hidden)
    # bf16 matmul operands / bf16 output with f32 accumulation vs. f32 reference.
    assert jnp.allclose(out, ref, atol=2.5e-2, rtol=2.5e-2), float(
        jnp.max(jnp.abs(out - ref))
    )

    print("KERNEL_OK")
</pallas_src>

<mosaic_0001>
module attributes {stable_mosaic.version = 11 : i64} {
  func.func @_expert_kernel(%arg0: i32, %arg1: i32, %arg2: memref<16x128xbf16, #tpu.memory_space<vmem>>, %arg3: memref<1x128x256xbf16, #tpu.memory_space<vmem>>, %arg4: memref<128x128xbf16, #tpu.memory_space<vmem>>, %arg5: memref<16x128xbf16, #tpu.memory_space<vmem>>, %arg6: memref<16x128xf32, #tpu.memory_space<vmem>>) attributes {dimension_semantics = [#tpu.dimension_semantics<parallel>, #tpu.dimension_semantics<arbitrary>], iteration_bounds = array<i64: 1, 1>, scalar_prefetch = 0 : i64, scratch_operands = 1 : i64, tpu.core_type = #tpu.core_type<tc>, window_params = [{transform_indices = @transform_0, window_bounds = array<i64: 16, 128>}, {transform_indices = @transform_1, window_bounds = array<i64: 1, 128, 256>}, {transform_indices = @transform_2, window_bounds = array<i64: 128, 128>}, {transform_indices = @transform_3, window_bounds = array<i64: 16, 128>}]} {
    %c0 = arith.constant 0 : index
    %c0_0 = arith.constant 0 : index
    %0 = vector.load %arg2[%c0, %c0_0] : memref<16x128xbf16, #tpu.memory_space<vmem>>, vector<16x128xbf16>
    %c0_1 = arith.constant 0 : index
    %c0_2 = arith.constant 0 : index
    %c0_3 = arith.constant 0 : index
    %1 = vector.load %arg3[%c0_1, %c0_2, %c0_3] : memref<1x128x256xbf16, #tpu.memory_space<vmem>>, vector<1x128x256xbf16>
    %2 = vector.shape_cast %1 : vector<1x128x256xbf16> to vector<128x256xbf16>
    %cst = arith.constant dense<0.000000e+00> : vector<16x256xf32>
    %3 = tpu.matmul %0, %2, %cst {dimension_numbers = #tpu.dot_dimension_numbers<[1], [0], [0], [1], [0, 0, 1, 1], [], []>} : vector<16x128xbf16>, vector<128x256xbf16>, vector<16x256xf32> -> vector<16x256xf32>
    %4 = vector.extract_strided_slice %3 {offsets = [0, 0], sizes = [16, 128], strides = [1, 1]} : vector<16x256xf32> to vector<16x128xf32>
    %5 = vector.extract_strided_slice %3 {offsets = [0, 128], sizes = [16, 128], strides = [1, 1]} : vector<16x256xf32> to vector<16x128xf32>
    %6 = arith.negf %4 : vector<16x128xf32>
    %7 = math.exp %6 : vector<16x128xf32>
    %cst_4 = arith.constant 1.000000e+00 : f32
    %8 = vector.broadcast %cst_4 : f32 to vector<16x128xf32>
    %9 = arith.addf %8, %7 : vector<16x128xf32>
    %10 = arith.divf %8, %9 : vector<16x128xf32>
    %11 = arith.mulf %4, %10 : vector<16x128xf32>
    %12 = arith.mulf %11, %5 : vector<16x128xf32>
    %13 = arith.truncf %12 : vector<16x128xf32> to vector<16x128xbf16>
    %c0_5 = arith.constant 0 : index
    %c0_6 = arith.constant 0 : index
    %14 = vector.load %arg4[%c0_5, %c0_6] : memref<128x128xbf16, #tpu.memory_space<vmem>>, vector<128x128xbf16>
    %cst_7 = arith.constant dense<0.000000e+00> : vector<16x128xf32>
    %15 = tpu.matmul %13, %14, %cst_7 {dimension_numbers = #tpu.dot_dimension_numbers<[1], [0], [0], [1], [0, 0, 1, 1], [], []>} : vector<16x128xbf16>, vector<128x128xbf16>, vector<16x128xf32> -> vector<16x128xf32>
    %c0_i32 = arith.constant 0 : i32
    %16 = arith.cmpi eq, %arg1, %c0_i32 : i32
    %17 = arith.extui %16 : i1 to i32
    %c0_i32_8 = arith.constant 0 : i32
    %18 = arith.cmpi ne, %17, %c0_i32_8 : i32
    scf.if %18 {
      %c0_13 = arith.constant 0 : index
      %c0_14 = arith.constant 0 : index
      %25 = vector.load %arg6[%c0_13, %c0_14] : memref<16x128xf32, #tpu.memory_space<vmem>>, vector<16x128xf32>
      tpu.vector_store %arg6[%c0_13, %c0_14], %15 {strides = array<i32>} : memref<16x128xf32, #tpu.memory_space<vmem>>, vector<16x128xf32>,
    } else {
    }
    %c0_i32_9 = arith.constant 0 : i32
    %19 = arith.cmpi sgt, %arg1, %c0_i32_9 : i32
    %20 = arith.extui %19 : i1 to i32
    %c0_i32_10 = arith.constant 0 : i32
    %21 = arith.cmpi ne, %20, %c0_i32_10 : i32
    scf.if %21 {
      %c0_13 = arith.constant 0 : index
      %c0_14 = arith.constant 0 : index
      %25 = vector.load %arg6[%c0_13, %c0_14] : memref<16x128xf32, #tpu.memory_space<vmem>>, vector<16x128xf32>
      %26 = arith.addf %25, %15 : vector<16x128xf32>
      %c0_15 = arith.constant 0 : index
      %c0_16 = arith.constant 0 : index
      %27 = vector.load %arg6[%c0_15, %c0_16] : memref<16x128xf32, #tpu.memory_space<vmem>>, vector<16x128xf32>
      tpu.vector_store %arg6[%c0_15, %c0_16], %26 {strides = array<i32>} : memref<16x128xf32, #tpu.memory_space<vmem>>, vector<16x128xf32>,
    } else {
    }
    %c0_i32_11 = arith.constant 0 : i32
    %22 = arith.cmpi eq, %arg1, %c0_i32_11 : i32
    %23 = arith.extui %22 : i1 to i32
    %c0_i32_12 = arith.constant 0 : i32
    %24 = arith.cmpi ne, %23, %c0_i32_12 : i32
    scf.if %24 {
      %c0_13 = arith.constant 0 : index
      %c0_14 = arith.constant 0 : index
      %25 = vector.load %arg6[%c0_13, %c0_14] : memref<16x128xf32, #tpu.memory_space<vmem>>, vector<16x128xf32>
      %26 = arith.truncf %25 : vector<16x128xf32> to vector<16x128xbf16>
      %c0_15 = arith.constant 0 : index
      %c0_16 = arith.constant 0 : index
      %27 = vector.load %arg5[%c0_15, %c0_16] : memref<16x128xbf16, #tpu.memory_space<vmem>>, vector<16x128xbf16>
      tpu.vector_store %arg5[%c0_15, %c0_16], %26 {strides = array<i32>} : memref<16x128xbf16, #tpu.memory_space<vmem>>, vector<16x128xbf16>,
    } else {
    }
    return
  }
  func.func @transform_0(%arg0: i32, %arg1: i32) -> (i32, i32) {
    %c0_i32 = arith.constant 0 : i32
    %c0_i32_0 = arith.constant 0 : i32
    return %arg0, %c0_i32 : i32, i32
  }
  func.func @transform_1(%arg0: i32, %arg1: i32) -> (i32, i32, i32) {
    %c0_i32 = arith.constant 0 : i32
    %c0_i32_0 = arith.constant 0 : i32
    %c0_i32_1 = arith.constant 0 : i32
    return %arg1, %c0_i32, %c0_i32_0 : i32, i32, i32
  }
  func.func @transform_2(%arg0: i32, %arg1: i32) -> (i32, i32) {
    %c0_i32 = arith.constant 0 : i32
    %c0_i32_0 = arith.constant 0 : i32
    return %arg1, %c0_i32 : i32, i32
  }
  func.func @transform_3(%arg0: i32, %arg1: i32) -> (i32, i32) {
    %c0_i32 = arith.constant 0 : i32
    %c0_i32_0 = arith.constant 0 : i32
    return %arg0, %c0_i32 : i32, i32
  }
}

</mosaic_0001>

<llo_original>
// kernel: expert_forward.1
$region0: #{expert_forward.1}
  #allocation0 [shape = 'u32[]', space=smem, size = 0x4, offset = 0x4, fixed_abs, tag = 'smem constant byte address 0x4 - core index']
  #allocation1 [shape = 'u32[144,128]{1,0:T(1,128)}', space=vmem, size = 0x12000, scoped, tag = 'internal scratch']
  #allocation2 [shape = 'f32[16,128]{1,0:T(8,128)}', space=vmem, size = 0x2000, scoped, tag = 'scratch operand']
  %s0 = inlined_call_operand.vmem [shape: bf16[16,128], index: 0, kind: input, shape index: {}]
  %s1 = inlined_call_operand.hbm [shape: bf16[1,128,256], index: 1, kind: input, shape index: {}]
  %s2 = inlined_call_operand.hbm [shape: bf16[128,128], index: 2, kind: input, shape index: {}]
  %s3 = inlined_call_operand.vmem [shape: bf16[16,128], index: 3, kind: output, shape index: {}]
  %s4 = sld [smem:[#allocation0]]
  $region42: #{expert_forward.1} parent=0
    _
  %s6 = ssub.s32 1, %s4
  %s7 = scalar_select 0, %s6, %s4
  $region1: #{expert_forward.1} parent=0
    #allocation3 [shape = 'u8[65536]{0}', space=vmem, size = 0x10000, scoped, tag = 'input window, operand 1, single buffered']
    #allocation4 [shape = 's32[1]{0}', space=sflag, size = 0x4, scoped, tag = 'scoped memory for expert_forward.1']
    #allocation5 [shape = 'u8[32768]{0}', space=vmem, size = 0x8000, scoped, tag = 'input window, operand 2, single buffered']
    #allocation6 [shape = 's32[1]{0}', space=sflag, size = 0x4, scoped, tag = 'scoped memory for expert_forward.1']
    %8 = vsyncpa [#allocation4], 0
    %9 = vsyncpa [#allocation6], 0
    // Predicated region
    $region2: #{expert_forward.1} parent=1 // pred_check
      _
    $region3: #{expert_forward.1} parent=1 // pred_check_branch
      %11 = sbr.rel (0) target = $region5
    $region4: #{expert_forward.1} parent=1 // pred_region
      _
    $region5: #{expert_forward.1} parent=1 // pred_fallthru
      _
    // Predicated region
    $region6: #{expert_forward.1} parent=1 // pred_check
      _
    $region7: #{expert_forward.1} parent=1 // pred_check_branch
      %13 = sbr.rel (0) target = $region9
    $region8: #{expert_forward.1} parent=1 // pred_region
      %s15 = ssub.s32 2048, 2048
      %16 = vsyncadd [#allocation4], %s15
      %s17 = sshll.u32 [#allocation3], 4
      %s18 = int_to_ptr.vmem [resolvable:$true] %s17
      %23 = dma.hbm_to_vmem [thread:$0]  %s1, 2048, %s18, [#allocation4], 128, 128, 8
    $region9: #{expert_forward.1} parent=1 // pred_fallthru
      _
    // Predicated region
    $region10: #{expert_forward.1} parent=1 // pred_check
      _
    $region11: #{expert_forward.1} parent=1 // pred_check_branch
      %25 = sbr.rel (0) target = $region13
    $region12: #{expert_forward.1} parent=1 // pred_region
      %s27 = ssub.s32 1024, 1024
      %28 = vsyncadd [#allocation6], %s27
      %s29 = sshll.u32 [#allocation5], 4
      %s30 = int_to_ptr.vmem [resolvable:$true] %s29
      %35 = dma.hbm_to_vmem [thread:$0]  %s2, 1024, %s30, [#allocation6], 64, 64, 4
    $region13: #{expert_forward.1} parent=1 // pred_fallthru
      _
    // Predicated region
    $region14: #{expert_forward.1} parent=1 // pred_check
      _
    $region15: #{expert_forward.1} parent=1 // pred_check_branch
      %37 = sbr.rel (0) target = $region17
    $region16: #{expert_forward.1} parent=1 // pred_region
      %38 = dma.done [#allocation4], 2048
    $region17: #{expert_forward.1} parent=1 // pred_fallthru
      _
    // Predicated region
    $region18: #{expert_forward.1} parent=1 // pred_check
      _
    $region19: #{expert_forward.1} parent=1 // pred_check_branch
      %40 = sbr.rel (0) target = $region21
    $region20: #{expert_forward.1} parent=1 // pred_region
      %41 = dma.done [#allocation6], 1024
    $region21: #{expert_forward.1} parent=1 // pred_fallthru
      _
    %v43 = vld [vmem:[%s0] sm:$0xf]
    %v44 = vld [vmem:[%s0 + $0x4] sm:$0xf]
    %v45 = vld [vmem:[#allocation3] sm:$0xff]
    %v46 = vld [vmem:[#allocation3 + $0x8] sm:$0xff]
    %v47 = vld [vmem:[#allocation3 + $0x10] sm:$0xff]
    %v48 = vld [vmem:[#allocation3 + $0x18] sm:$0xff]
    %v49 = vld [vmem:[#allocation3 + $0x20] sm:$0xff]
    %v50 = vld [vmem:[#allocation3 + $0x28] sm:$0xff]
    %v51 = vld [vmem:[#allocation3 + $0x30] sm:$0xff]
    %v52 = vld [vmem:[#allocation3 + $0x38] sm:$0xff]
    %v53 = vld [vmem:[#allocation3 + $0x40] sm:$0xff]
    %v54 = vld [vmem:[#allocation3 + $0x48] sm:$0xff]
    %v55 = vld [vmem:[#allocation3 + $0x50] sm:$0xff]
    %v56 = vld [vmem:[#allocation3 + $0x58] sm:$0xff]
    %v57 = vld [vmem:[#allocation3 + $0x60] sm:$0xff]
    %v58 = vld [vmem:[#allocation3 + $0x68] sm:$0xff]
    %v59 = vld [vmem:[#allocation3 + $0x70] sm:$0xff]
    %v60 = vld [vmem:[#allocation3 + $0x78] sm:$0xff]
    %v63 = vunpack.c.l.b16 %v43
    %v64 = vunpack.c.l.b16 %v44
    %v65 = vpack.c.b16 %v64, %v63
    %v83 = vunpack.c.l.b16 %v45
    %v84 = vunpack.c.h.b16 %v45
    %v85 = vunpack.c.l.b16 %v46
    %v86 = vunpack.c.h.b16 %v46
    %v87 = vunpack.c.l.b16 %v47
    %v88 = vunpack.c.h.b16 %v47
    %v89 = vunpack.c.l.b16 %v48
    %v90 = vunpack.c.h.b16 %v48
    %v91 = vunpack.c.l.b16 %v49
    %v92 = vunpack.c.h.b16 %v49
    %v93 = vunpack.c.l.b16 %v50
    %v94 = vunpack.c.h.b16 %v50
    %v95 = vunpack.c.l.b16 %v51
    %v96 = vunpack.c.h.b16 %v51
    %v97 = vunpack.c.l.b16 %v52
    %v98 = vunpack.c.h.b16 %v52
    %v99 = vunpack.c.l.b16 %v53
    %v100 = vunpack.c.h.b16 %v53
    %v101 = vunpack.c.l.b16 %v54
    %v102 = vunpack.c.h.b16 %v54
    %v103 = vunpack.c.l.b16 %v55
    %v104 = vunpack.c.h.b16 %v55
    %v105 = vunpack.c.l.b16 %v56
    %v106 = vunpack.c.h.b16 %v56
    %v107 = vunpack.c.l.b16 %v57
    %v108 = vunpack.c.h.b16 %v57
    %v109 = vunpack.c.l.b16 %v58
    %v110 = vunpack.c.h.b16 %v58
    %v111 = vunpack.c.l.b16 %v59
    %v112 = vunpack.c.h.b16 %v59
    %v113 = vunpack.c.l.b16 %v60
    %v114 = vunpack.c.h.b16 %v60
    %v115 = vpack.c.b16 %v85, %v83
    %v116 = vpack.c.b16 %v86, %v84
    %v117 = vpack.c.b16 %v89, %v87
    %v118 = vpack.c.b16 %v90, %v88
    %v119 = vpack.c.b16 %v93, %v91
    %v120 = vpack.c.b16 %v94, %v92
    %v121 = vpack.c.b16 %v97, %v95
    %v122 = vpack.c.b16 %v98, %v96
    %v123 = vpack.c.b16 %v101, %v99
    %v124 = vpack.c.b16 %v102, %v100
    %v125 = vpack.c.b16 %v105, %v103
    %v126 = vpack.c.b16 %v106, %v104
    %v127 = vpack.c.b16 %v109, %v107
    %v128 = vpack.c.b16 %v110, %v108
    %v129 = vpack.c.b16 %v113, %v111
    %v130 = vpack.c.b16 %v114, %v112
    %147 = vmatprep.subr.bf16.mxu0 %v130
    %148 = vmatpush1.bf16.msra.mxu0 %v129
    %149 = vmatprep.subr.bf16.mxu0 %v128
    %150 = vmatpush1.bf16.msra.mxu0 %v127
    %151 = vmatprep.subr.bf16.mxu0 %v126
    %152 = vmatpush1.bf16.msra.mxu0 %v125
    %153 = vmatprep.subr.bf16.mxu0 %v124
    %154 = vmatpush1.bf16.msra.mxu0 %v123
    %155 = vmatprep.subr.bf16.mxu0 %v122
    %156 = vmatpush1.bf16.msra.mxu0 %v121
    %157 = vmatprep.subr.bf16.mxu0 %v120
    %158 = vmatpush1.bf16.msra.mxu0 %v119
    %159 = vmatprep.subr.bf16.mxu0 %v118
    %160 = vmatpush1.bf16.msra.mxu0 %v117
    %161 = vmatprep.subr.bf16.mxu0 %v116
    %162 = vmatpush1.bf16.msra.mxu0 %v115
    %163 = vmatprep.subr.bf16.mxu0 0
    %164 = vmatpush2.bf16.msra.mxu0 0
    %165 = vmatprep.subr.bf16.mxu0 0
    %166 = vmatpush2.bf16.msra.mxu0 0
    %167 = vmatprep.subr.bf16.mxu0 0
    %168 = vmatpush2.bf16.msra.mxu0 0
    %169 = vmatprep.subr.bf16.mxu0 0
    %170 = vmatpush2.bf16.msra.mxu0 0
    %171 = vmatprep.subr.bf16.mxu0 0
    %172 = vmatpush2.bf16.msra.mxu0 0
    %173 = vmatprep.subr.bf16.mxu0 0
    %174 = vmatpush2.bf16.msra.mxu0 0
    %175 = vmatprep.subr.bf16.mxu0 0
    %176 = vmatpush2.bf16.msra.mxu0 0
    %177 = vmatprep.subr.bf16.mxu0 0
    %178 = vmatpush2.bf16.msra.mxu0 0
    %179 = vmatprep.mubr.bf16.mxu0 0
    %180 = vmatmul.mubr.bf16.gmra.mxu0 %v65
    %v181 = vpop.f32.mrf.mxu0
    %v182 = vadd.f32 0.0, %v181
    %v183 = vpop.f32.mrf.mxu0
    %v184 = vadd.f32 0.0, %v183
    %v185 = vpop.f32.mrf.mxu0
    %v186 = vadd.f32 0.0, %v185
    %v187 = vpop.f32.mrf.mxu0
    %v188 = vadd.f32 0.0, %v187
    %189 = vdwg.mxu0
    %v190 = vxor.u32 %v182, 2147483648
    %v191 = vxor.u32 %v186, 2147483648
    %v192 = vmul.f32 %v190, 1.442695
    %v193 = vpow.pop %v192
    %v194 = vmul.f32 %v191, 1.442695
    %v195 = vpow.pop %v194
    %v196 = vadd.f32 %v193, 1.0
    %v197 = vadd.f32 %v195, 1.0
    %v198 = vrcp.pop %v196
    %v199 = vmul.f32 1.0, %v198
    %v200 = vrcp.pop %v197
    %v201 = vmul.f32 1.0, %v200
    %v202 = vmul.f32 %v182, %v199
    %v203 = vmul.f32 %v186, %v201
    %v204 = vmul.f32 %v202, %v184
    %v205 = vmul.f32 %v203, %v188
    %v206 = vpack.c.bf16 %v205, %v204
    %v207 = vld [vmem:[#allocation5] sm:$0xf]
    %v208 = vld [vmem:[#allocation5 + $0x4] sm:$0xf]
    %v209 = vld [vmem:[#allocation5 + $0x8] sm:$0xf]
    %v210 = vld [vmem:[#allocation5 + $0xc] sm:$0xf]
    %v211 = vld [vmem:[#allocation5 + $0x10] sm:$0xf]
    %v212 = vld [vmem:[#allocation5 + $0x14] sm:$0xf]
    %v213 = vld [vmem:[#allocation5 + $0x18] sm:$0xf]
    %v214 = vld [vmem:[#allocation5 + $0x1c] sm:$0xf]
    %v215 = vld [vmem:[#allocation5 + $0x20] sm:$0xf]
    %v216 = vld [vmem:[#allocation5 + $0x24] sm:$0xf]
    %v217 = vld [vmem:[#allocation5 + $0x28] sm:$0xf]
    %v218 = vld [vmem:[#allocation5 + $0x2c] sm:$0xf]
    %v219 = vld [vmem:[#allocation5 + $0x30] sm:$0xf]
    %v220 = vld [vmem:[#allocation5 + $0x34] sm:$0xf]
    %v221 = vld [vmem:[#allocation5 + $0x38] sm:$0xf]
    %v222 = vld [vmem:[#allocation5 + $0x3c] sm:$0xf]
    %v239 = vunpack.c.l.b16 %v207
    %v240 = vunpack.c.l.b16 %v208
    %v241 = vunpack.c.l.b16 %v209
    %v242 = vunpack.c.l.b16 %v210
    %v243 = vunpack.c.l.b16 %v211
    %v244 = vunpack.c.l.b16 %v212
    %v245 = vunpack.c.l.b16 %v213
    %v246 = vunpack.c.l.b16 %v214
    %v247 = vunpack.c.l.b16 %v215
    %v248 = vunpack.c.l.b16 %v216
    %v249 = vunpack.c.l.b16 %v217
    %v250 = vunpack.c.l.b16 %v218
    %v251 = vunpack.c.l.b16 %v219
    %v252 = vunpack.c.l.b16 %v220
    %v253 = vunpack.c.l.b16 %v221
    %v254 = vunpack.c.l.b16 %v222
    %v255 = vpack.c.b16 %v240, %v239
    %v256 = vpack.c.b16 %v242, %v241
    %v257 = vpack.c.b16 %v244, %v243
    %v258 = vpack.c.b16 %v246, %v245
    %v259 = vpack.c.b16 %v248, %v247
    %v260 = vpack.c.b16 %v250, %v249
    %v261 = vpack.c.b16 %v252, %v251
    %v262 = vpack.c.b16 %v254, %v253
    %271 = vmatprep.subr.bf16.mxu0 0
    %272 = vmatpush1.bf16.msra.mxu0 %v262
    %273 = vmatprep.subr.bf16.mxu0 0
    %274 = vmatpush1.bf16.msra.mxu0 %v261
    %275 = vmatprep.subr.bf16.mxu0 0
    %276 = vmatpush1.bf16.msra.mxu0 %v260
    %277 = vmatprep.subr.bf16.mxu0 0
    %278 = vmatpush1.bf16.msra.mxu0 %v259
    %279 = vmatprep.subr.bf16.mxu0 0
    %280 = vmatpush1.bf16.msra.mxu0 %v258
    %281 = vmatprep.subr.bf16.mxu0 0
    %282 = vmatpush1.bf16.msra.mxu0 %v257
    %283 = vmatprep.subr.bf16.mxu0 0
    %284 = vmatpush1.bf16.msra.mxu0 %v256
    %285 = vmatprep.subr.bf16.mxu0 0
    %286 = vmatpush1.bf16.msra.mxu0 %v255
    %287 = vmatprep.subr.bf16.mxu0 0
    %288 = vmatpush2.bf16.msra.mxu0 0
    %289 = vmatprep.subr.bf16.mxu0 0
    %290 = vmatpush2.bf16.msra.mxu0 0
    %291 = vmatprep.subr.bf16.mxu0 0
    %292 = vmatpush2.bf16.msra.mxu0 0
    %293 = vmatprep.subr.bf16.mxu0 0
    %294 = vmatpush2.bf16.msra.mxu0 0
    %295 = vmatprep.subr.bf16.mxu0 0
    %296 = vmatpush2.bf16.msra.mxu0 0
    %297 = vmatprep.subr.bf16.mxu0 0
    %298 = vmatpush2.bf16.msra.mxu0 0
    %299 = vmatprep.subr.bf16.mxu0 0
    %300 = vmatpush2.bf16.msra.mxu0 0
    %301 = vmatprep.subr.bf16.mxu0 0
    %302 = vmatpush2.bf16.msra.mxu0 0
    %303 = vmatprep.mubr.bf16.mxu0 0
    %304 = vmatmul.mubr.bf16.gmra.mxu0 %v206
    %v305 = vpop.f32.mrf.mxu0
    %v306 = vadd.f32 0.0, %v305
    %v307 = vpop.f32.mrf.mxu0
    %v308 = vpop.f32.mrf.mxu0
    %v309 = vadd.f32 0.0, %v308
    %v310 = vpop.f32.mrf.mxu0
    %311 = vdwg.mxu0
    %p312 = scmp.eq.s32.totalorder 0, 0
    // Predicated region
    $region22: #{expert_forward.1} parent=1 // pred_check
      %p313 = pneg %p312
    $region23: #{expert_forward.1} parent=1 // pred_check_branch
      %315 = sbr.rel (%p313) target = $region25
    $region24: #{expert_forward.1} parent=1 // pred_region
      %316 = vst [vmem:[#allocation2] sm:$0xff] %v306
      %317 = vst [vmem:[#allocation2 + $0x8] sm:$0xff] %v309
    $region25: #{expert_forward.1} parent=1 // pred_fallthru
      _
    %p318 = scmp.gt.s32.totalorder 0, 0
    // Predicated region
    $region26: #{expert_forward.1} parent=1 // pred_check
      %p319 = pneg %p318
    $region27: #{expert_forward.1} parent=1 // pred_check_branch
      %321 = sbr.rel (%p319) target = $region29
    $region28: #{expert_forward.1} parent=1 // pred_region
      %v322 = vld [vmem:[#allocation2] sm:$0xff]
      %v323 = vld [vmem:[#allocation2 + $0x8] sm:$0xff]
      %v324 = vadd.f32 %v322, %v306
      %v325 = vadd.f32 %v323, %v309
      %326 = vst [vmem:[#allocation2] sm:$0xff] %v324
      %327 = vst [vmem:[#allocation2 + $0x8] sm:$0xff] %v325
    $region29: #{expert_forward.1} parent=1 // pred_fallthru
      _
    // Predicated region
    $region30: #{expert_forward.1} parent=1 // pred_check
      %p328 = pneg %p312
    $region31: #{expert_forward.1} parent=1 // pred_check_branch
      %330 = sbr.rel (%p328) target = $region33
    $region32: #{expert_forward.1} parent=1 // pred_region
      %v331 = vld [vmem:[#allocation2] sm:$0xff]
      %v332 = vld [vmem:[#allocation2 + $0x8] sm:$0xff]
      %v333 = vpack.c.bf16 %v332, %v331
      %v335 = vunpack.c.l.b16 %v333
      %v336 = vunpack.c.h.b16 %v333
      %v337 = vpack.c.b16 %v335, %v335
      %v338 = vpack.c.b16 %v336, %v336
      %341 = vst [vmem:[%s3] sm:$0xf] %v337
      %342 = vst [vmem:[%s3 + $0x4] sm:$0xf] %v338
    $region33: #{expert_forward.1} parent=1 // pred_fallthru
      _
    // Predicated region
    $region34: #{expert_forward.1} parent=1 // pred_check
      _
    $region35: #{expert_forward.1} parent=1 // pred_check_branch
      %344 = sbr.rel (0) target = $region37
    $region36: #{expert_forward.1} parent=1 // pred_region
      _
    $region37: #{expert_forward.1} parent=1 // pred_fallthru
      _
    // Predicated region
    $region38: #{expert_forward.1} parent=1 // pred_check
      _
    $region39: #{expert_forward.1} parent=1 // pred_check_branch
      %346 = sbr.rel (0) target = $region41
    $region40: #{expert_forward.1} parent=1 // pred_region
      _
    $region41: #{expert_forward.1} parent=1 // pred_fallthru
      _
    %347 = vsyncpa [#allocation4], 1
    %348 = vsyncpa [#allocation6], 1

</llo_original>
